<compile_context>
chip_gen: v6e
topology: v6e:2x2x1
jax: 0.10.0
libtpu: 0.0.40
codegen_flags: <defaults>
</compile_context>

<pallas_src>
import jax
import jax.numpy as jnp
from jax import lax
from jax.experimental import pallas as pl
from jax.experimental.pallas import tpu as pltpu


def _round_up(x, m):
    return ((x + m - 1) // m) * m


def _vmem_budget_bytes():
    """~75% of this generation's per-core VMEM (v5e/v6e: 128 MiB, v7x: 64 MiB)."""
    cap = 64 * 1024 * 1024  # conservative fallback = v7x
    try:
        info = pltpu.get_tpu_info()
        cap = int(getattr(info, "vmem_capacity_bytes", cap) or cap)
    except Exception:
        pass
    budget = (cap * 3) // 4
    return int(min(max(budget, 32 * 1024 * 1024), 100 * 1024 * 1024))


def _pick_slices_per_block(n_slices, lanes, itemsize, vmem_budget):
    """Largest multiple-of-8 slice count whose block fits the VMEM budget."""
    lanes_padded = _round_up(lanes, 128)
    # 2 inputs x 2 pipeline buffers (input dtype) + ~8 full-block f32 temporaries.
    per_slice = lanes_padded * (4 * itemsize + 8 * 4)
    t_budget = max(1, vmem_budget // per_slice)
    if n_slices <= 8:
        # Single full-extent block (tiny problem; sublane rule satisfied by
        # block == full extent).
        # TODO(synk): for tiny N with huge H*W, split each image along H (with a
        # 1-row halo) so v7x's second TensorCore also gets work.
        return n_slices
    t = min(t_budget, (n_slices + 1) // 2)  # keep >= 2 grid steps (v7x: 2 TCs)
    return max(8, (t // 8) * 8)             # 8-aligned sublane block dim


def _make_gdl_kernel(slices_per_block, lanes, width, height, n_slices, num_blocks):
    needs_tail_mask = (num_blocks * slices_per_block != n_slices)
    h_valid = (height - 1) * width  # lanes that have a valid image row below them

    def kernel(x_ref, t_ref, wmask_ref, out_ref):
        shape = (slices_per_block, lanes)

        # diff(x) - diff(t) == diff(x - t): one shifted operand instead of two.
        # TODO(synk): for bf16 inputs on v6e/v7x, keep d and the rolled operands in
        # bf16 and cast to f32 only at the square-accumulate (not on v5e: no bf16 VPU).
        d = x_ref[...].astype(jnp.float32) - t_ref[...].astype(jnp.float32)

        if needs_tail_mask:
            # Ragged tail handled in-kernel (no wrapper-side jnp.pad): slices whose
            # global index >= n_slices are Pallas edge padding -> zero them out.
            slice_idx = (pl.program_id(0) * slices_per_block
                         + lax.broadcasted_iota(jnp.int32, shape, 0))
            d = jnp.where(slice_idx < n_slices, d, 0.0)

        # diff along W: lane rotate by 1 (rolled[i] == d[i+1]); wmask (precomputed
        # 1/0 row) zeroes every last-column lane, including the wrap-around lane.
        di = (pltpu.roll(d, shift=lanes - 1, axis=1) - d) * wmask_ref[...]
        part_i = jnp.sum(di * di)

        # diff along H: lane rotate by W (rolled[i] == d[i+W]); zero the last image
        # row (lanes >= (H-1)*W), which also kills the wrap-around.
        dj = pltpu.roll(d, shift=lanes - width, axis=1) - d
        lane = lax.broadcasted_iota(jnp.int32, shape, 1)
        dj = jnp.where(lane < h_valid, dj, 0.0)
        part_j = jnp.sum(dj * dj)

        # Per-block partial into an aligned (8,128) tile: unmasked stores and an
        # output block owned exclusively by this grid step (parallel grid axis).
        out_ref[...] = jnp.broadcast_to(part_i + part_j, out_ref.shape)

    return kernel


def gradient_difference_loss(inputs, targets, by_batch):
    """Exact semantics of GradientDifferenceLoss.forward (NCHW inputs)."""
    assert inputs.shape == targets.shape and inputs.ndim == 4
    B, C, H, W = inputs.shape
    N = B * C
    L = H * W

    # Lane-dense, layout-free reshape: one image per row.
    x2 = inputs.reshape(N, L)
    t2 = targets.reshape(N, L)

    itemsize = jnp.dtype(inputs.dtype).itemsize
    vmem_budget = _vmem_budget_bytes()
    T = _pick_slices_per_block(N, L, itemsize, vmem_budget)
    num_blocks = pl.cdiv(N, T)

    # Tiny constant row: 1.0 where the lane is NOT the last column of its image row.
    lane_ids = jnp.arange(L, dtype=jnp.int32)
    wmask = ((lane_ids % W) < (W - 1)).astype(jnp.float32).reshape(1, L)

    kernel = _make_gdl_kernel(T, L, W, H, N, num_blocks)

    partials = pl.pallas_call(
        kernel,
        out_shape=jax.ShapeDtypeStruct((num_blocks, 8, 128), jnp.float32),
        grid_spec=pltpu.PrefetchScalarGridSpec(
            num_scalar_prefetch=0,
            grid=(num_blocks,),
            in_specs=[
                pl.BlockSpec((T, L), lambda i: (i, 0)),
                pl.BlockSpec((T, L), lambda i: (i, 0)),
                pl.BlockSpec((1, L), lambda i: (0, 0)),
            ],
            out_specs=pl.BlockSpec((1, 8, 128), lambda i: (i, 0, 0)),
        ),
        compiler_params=pltpu.CompilerParams(
            dimension_semantics=("parallel",),
            vmem_limit_bytes=vmem_budget,
        ),
        cost_estimate=pl.CostEstimate(
            flops=10 * N * L,
            transcendentals=0,
            bytes_accessed=2 * N * L * itemsize + num_blocks * (L + 8 * 128) * 4,
        ),
    )(x2, t2, wmask)

    total = jnp.sum(partials[:, 0, 0])
    norm_div = (B * C) if by_batch else inputs.size
    return total / norm_div


def _reference(inputs, targets, by_batch):
    gi = (jnp.diff(inputs, axis=-1) - jnp.diff(targets, axis=-1)) ** 2
    gj = (jnp.diff(inputs, axis=-2) - jnp.diff(targets, axis=-2)) ** 2
    g = jnp.sum(gi) + jnp.sum(gj)
    if by_batch:
        return g / (inputs.shape[0] * inputs.shape[1])
    return g / inputs.size


if __name__ == "__main__":
    key = jax.random.PRNGKey(0)
    k1, k2, k3, k4 = jax.random.split(key, 4)

    # Case 1: module-spec shapes (B=2, C=4, 16x16). Narrow W -> lane-dense flatten
    # (L=256 lanes), single full-extent block.
    B, C, H, W = 2, 4, 16, 16
    inputs = jax.random.normal(k1, (B, C, H, W), dtype=jnp.float32)
    targets = jax.random.normal(k2, (B, C, H, W), dtype=jnp.float32)

    loss_by_batch = gradient_difference_loss(inputs, targets, by_batch=True)
    loss_by_elem = gradient_difference_loss(inputs, targets, by_batch=False)
    jax.block_until_ready(loss_by_batch)
    jax.block_until_ready(loss_by_elem)

    assert jnp.allclose(loss_by_batch, _reference(inputs, targets, True),
                        rtol=1e-4, atol=1e-5)
    assert jnp.allclose(loss_by_elem, _reference(inputs, targets, False),
                        rtol=1e-4, atol=1e-5)

    # Case 2: N=12 slices -> two blocks of 8 with a ragged tail of 4, exercising
    # the multi-block parallel grid and the in-kernel tail mask (no jnp.pad).
    B2, C2, H2, W2 = 3, 4, 24, 128
    inputs2 = jax.random.normal(k3, (B2, C2, H2, W2), dtype=jnp.float32)
    targets2 = jax.random.normal(k4, (B2, C2, H2, W2), dtype=jnp.float32)
    loss2 = gradient_difference_loss(inputs2, targets2, by_batch=False)
    jax.block_until_ready(loss2)
    assert jnp.allclose(loss2, _reference(inputs2, targets2, False),
                        rtol=1e-4, atol=1e-5)

    print("KERNEL_OK")
</pallas_src>

<mosaic_0001>
module attributes {stable_mosaic.version = 11 : i64} {
  func.func @kernel(%arg0: i32, %arg1: memref<8x256xf32, #tpu.memory_space<vmem>>, %arg2: memref<8x256xf32, #tpu.memory_space<vmem>>, %arg3: memref<1x256xf32, #tpu.memory_space<vmem>>, %arg4: memref<1x8x128xf32, #tpu.memory_space<vmem>>) attributes {dimension_semantics = [#tpu.dimension_semantics<parallel>], iteration_bounds = array<i64: 1>, scalar_prefetch = 0 : i64, scratch_operands = 0 : i64, tpu.core_type = #tpu.core_type<tc>, window_params = [{transform_indices = @transform_0, window_bounds = array<i64: 8, 256>}, {transform_indices = @transform_1, window_bounds = array<i64: 8, 256>}, {pipeline_mode = #tpu.pipeline_mode<synchronous>, transform_indices = @transform_2, window_bounds = array<i64: 1, 256>}, {transform_indices = @transform_3, window_bounds = array<i64: 1, 8, 128>}]} {
    %c0 = arith.constant 0 : index
    %c0_0 = arith.constant 0 : index
    %0 = vector.load %arg1[%c0, %c0_0] : memref<8x256xf32, #tpu.memory_space<vmem>>, vector<8x256xf32>
    %c0_1 = arith.constant 0 : index
    %c0_2 = arith.constant 0 : index
    %1 = vector.load %arg2[%c0_1, %c0_2] : memref<8x256xf32, #tpu.memory_space<vmem>>, vector<8x256xf32>
    %2 = arith.subf %0, %1 : vector<8x256xf32>
    %c255_i32 = arith.constant 255 : i32
    %3 = tpu.dynamic_rotate %2 by %c255_i32 dim 1 : vector<8x256xf32>, i32 -> vector<8x256xf32>
    %4 = arith.subf %3, %2 : vector<8x256xf32>
    %c0_3 = arith.constant 0 : index
    %c0_4 = arith.constant 0 : index
    %5 = vector.load %arg3[%c0_3, %c0_4] : memref<1x256xf32, #tpu.memory_space<vmem>>, vector<1x256xf32>
    %6 = vector.broadcast %5 : vector<1x256xf32> to vector<8x256xf32>
    %7 = arith.mulf %4, %6 : vector<8x256xf32>
    %8 = arith.mulf %7, %7 : vector<8x256xf32>
    %9 = vector.shape_cast %8 : vector<8x256xf32> to vector<1x8x256xf32>
    %cst = arith.constant dense<0.000000e+00> : vector<1xf32>
    %10 = vector.multi_reduction <add>, %9, %cst [1, 2] : vector<1x8x256xf32> to vector<1xf32>
    %11 = vector.shape_cast %10 : vector<1xf32> to vector<1x1x1xf32>
    %12 = vector.extract %11[0, 0, 0] : f32 from vector<1x1x1xf32>
    %c240_i32 = arith.constant 240 : i32
    %13 = tpu.dynamic_rotate %2 by %c240_i32 dim 1 : vector<8x256xf32>, i32 -> vector<8x256xf32>
    %14 = arith.subf %13, %2 : vector<8x256xf32>
    %15 = tpu.iota {dimensions = array<i32: 1>} : vector<8x256xi32>
    %c240_i32_5 = arith.constant 240 : i32
    %16 = vector.broadcast %c240_i32_5 : i32 to vector<8x256xi32>
    %17 = arith.cmpi slt, %15, %16 : vector<8x256xi32>
    %cst_6 = arith.constant 0.000000e+00 : f32
    %18 = vector.broadcast %cst_6 : f32 to vector<8x256xf32>
    %19 = arith.select %17, %14, %18 : vector<8x256xi1>, vector<8x256xf32>
    %20 = arith.mulf %19, %19 : vector<8x256xf32>
    %21 = vector.shape_cast %20 : vector<8x256xf32> to vector<1x8x256xf32>
    %cst_7 = arith.constant dense<0.000000e+00> : vector<1xf32>
    %22 = vector.multi_reduction <add>, %21, %cst_7 [1, 2] : vector<1x8x256xf32> to vector<1xf32>
    %23 = vector.shape_cast %22 : vector<1xf32> to vector<1x1x1xf32>
    %24 = vector.extract %23[0, 0, 0] : f32 from vector<1x1x1xf32>
    %25 = arith.addf %12, %24 : f32
    %26 = vector.broadcast %25 : f32 to vector<1x8x128xf32>
    %c0_8 = arith.constant 0 : index
    %c0_9 = arith.constant 0 : index
    %c0_10 = arith.constant 0 : index
    %27 = vector.load %arg4[%c0_8, %c0_9, %c0_10] : memref<1x8x128xf32, #tpu.memory_space<vmem>>, vector<1x8x128xf32>
    tpu.vector_store %arg4[%c0_8, %c0_9, %c0_10], %26 {strides = array<i32>} : memref<1x8x128xf32, #tpu.memory_space<vmem>>, vector<1x8x128xf32>,
    return
  }
  func.func @transform_0(%arg0: i32) -> (i32, i32) {
    %c0_i32 = arith.constant 0 : i32
    %c0_i32_0 = arith.constant 0 : i32
    return %arg0, %c0_i32 : i32, i32
  }
  func.func @transform_1(%arg0: i32) -> (i32, i32) {
    %c0_i32 = arith.constant 0 : i32
    %c0_i32_0 = arith.constant 0 : i32
    return %arg0, %c0_i32 : i32, i32
  }
  func.func @transform_2(%arg0: i32) -> (i32, i32) {
    %c0_i32 = arith.constant 0 : i32
    %c0_i32_0 = arith.constant 0 : i32
    %c0_i32_1 = arith.constant 0 : i32
    return %c0_i32, %c0_i32_0 : i32, i32
  }
  func.func @transform_3(%arg0: i32) -> (i32, i32, i32) {
    %c0_i32 = arith.constant 0 : i32
    %c0_i32_0 = arith.constant 0 : i32
    %c0_i32_1 = arith.constant 0 : i32
    return %arg0, %c0_i32, %c0_i32_0 : i32, i32, i32
  }
}

</mosaic_0001>

<llo_original>
// kernel: tpu_custom_call.1
$region0: #{tpu_custom_call.1}
  #allocation0 [shape = 'u32[]', space=smem, size = 0x4, offset = 0x4, fixed_abs, tag = 'smem constant byte address 0x4 - core index']
  #allocation1 [shape = 'u32[144,128]{1,0:T(1,128)}', space=vmem, size = 0x12000, scoped, tag = 'internal scratch']
  %s0 = inlined_call_operand.hbm [shape: f32[8,256], index: 0, kind: input, shape index: {}]
  %s1 = inlined_call_operand.hbm [shape: f32[8,256], index: 1, kind: input, shape index: {}]
  %s2 = inlined_call_operand.vmem [shape: f32[1,256], index: 2, kind: input, shape index: {}]
  %s3 = inlined_call_operand.hbm [shape: f32[1,8,128], index: 3, kind: output, shape index: {}]
  %s4 = sld [smem:[#allocation0]]
  $region30: #{tpu_custom_call.1} parent=0
    _
  %s6 = ssub.s32 1, %s4
  %s7 = scalar_select 0, %s6, %s4
  $region1: #{tpu_custom_call.1} parent=0
    #allocation2 [shape = 'u8[8192]{0}', space=vmem, size = 0x2000, scoped, tag = 'input window, operand 0, single buffered']
    #allocation3 [shape = 's32[1]{0}', space=sflag, size = 0x4, scoped, tag = 'scoped memory for tpu_custom_call.1']
    #allocation4 [shape = 's32[1]{0}', space=sflag, size = 0x4, scoped, tag = 'scoped memory for tpu_custom_call.1']
    #allocation5 [shape = 'u8[8192]{0}', space=vmem, size = 0x2000, scoped, tag = 'input window, operand 1, single buffered']
    #allocation6 [shape = 's32[1]{0}', space=sflag, size = 0x4, scoped, tag = 'scoped memory for tpu_custom_call.1']
    #allocation7 [shape = 'u8[4096]{0}', space=vmem, size = 0x1000, scoped, tag = 'output window, operand 0, single buffered']
    %8 = vsyncpa [#allocation3], 0
    %9 = vsyncpa [#allocation6], 0
    %10 = vsyncpa [#allocation4], 0
    // Predicated region
    $region2: #{tpu_custom_call.1} parent=1 // pred_check
      _
    $region3: #{tpu_custom_call.1} parent=1 // pred_check_branch
      %12 = sbr.rel (0) target = $region5
    $region4: #{tpu_custom_call.1} parent=1 // pred_region
      %s14 = ssub.s32 256, 256
      %15 = vsyncadd [#allocation3], %s14
      %s17 = sshll.u32 [#allocation2], 4
      %s18 = int_to_ptr.vmem [resolvable:$true] %s17
      %20 = dma.hbm_to_vmem [thread:$0]  %s0, 256, %s18, [#allocation3]
    $region5: #{tpu_custom_call.1} parent=1 // pred_fallthru
      _
    // Predicated region
    $region6: #{tpu_custom_call.1} parent=1 // pred_check
      _
    $region7: #{tpu_custom_call.1} parent=1 // pred_check_branch
      %22 = sbr.rel (0) target = $region9
    $region8: #{tpu_custom_call.1} parent=1 // pred_region
      %s24 = ssub.s32 256, 256
      %25 = vsyncadd [#allocation6], %s24
      %s27 = sshll.u32 [#allocation5], 4
      %s28 = int_to_ptr.vmem [resolvable:$true] %s27
      %30 = dma.hbm_to_vmem [thread:$0]  %s1, 256, %s28, [#allocation6]
    $region9: #{tpu_custom_call.1} parent=1 // pred_fallthru
      _
    // Predicated region
    $region10: #{tpu_custom_call.1} parent=1 // pred_check
      _
    $region11: #{tpu_custom_call.1} parent=1 // pred_check_branch
      %32 = sbr.rel (0) target = $region13
    $region12: #{tpu_custom_call.1} parent=1 // pred_region
      _
    $region13: #{tpu_custom_call.1} parent=1 // pred_fallthru
      _
    // Predicated region
    $region14: #{tpu_custom_call.1} parent=1 // pred_check
      _
    $region15: #{tpu_custom_call.1} parent=1 // pred_check_branch
      %34 = sbr.rel (0) target = $region17
    $region16: #{tpu_custom_call.1} parent=1 // pred_region
      %35 = dma.done [#allocation3], 256
    $region17: #{tpu_custom_call.1} parent=1 // pred_fallthru
      _
    // Predicated region
    $region18: #{tpu_custom_call.1} parent=1 // pred_check
      _
    $region19: #{tpu_custom_call.1} parent=1 // pred_check_branch
      %37 = sbr.rel (0) target = $region21
    $region20: #{tpu_custom_call.1} parent=1 // pred_region
      %38 = dma.done [#allocation6], 256
    $region21: #{tpu_custom_call.1} parent=1 // pred_fallthru
      _
    %v39 = vld [vmem:[#allocation2] sm:$0xff]
    %v40 = vld [vmem:[#allocation2 + $0x8] sm:$0xff]
    %v41 = vld [vmem:[#allocation5] sm:$0xff]
    %v42 = vld [vmem:[#allocation5 + $0x8] sm:$0xff]
    %v43 = vsub.f32 %v39, %v41
    %v44 = vsub.f32 %v40, %v42
    %45 = vrot.lane.b32.xlu0 %v43, 127
    %v46 = vpop.permute.xlu0 %45
    %47 = vrot.lane.b32.xlu0 %v44, 127
    %v48 = vpop.permute.xlu0 %47
    %v49 = vlaneseq
    %v50 = vand.u32 %v49, 127
    %vm51 = vcmp.lt.s32.totalorder %v50, 127
    %v52 = vsel %vm51, %v46, %v48
    %v53 = vsel %vm51, %v48, %v46
    %v54 = vsub.f32 %v52, %v43
    %v55 = vsub.f32 %v53, %v44
    %v56 = vld [vmem:[%s2] sm:$0x3]
    %v58 = vlaneseq
    %v59 = vshrl.u32 %v58, 7
    %v60 = vsub.s32 0, %v59
    %v61 = vrot.slane %v56, %v60
    %v62 = vlaneseq
    %v63 = vshrl.u32 %v62, 7
    %v64 = vsub.s32 1, %v63
    %v65 = vrot.slane %v56, %v64
    %v68 = vmul.f32 %v54, %v61
    %v69 = vmul.f32 %v55, %v65
    %v70 = vmul.f32 %v68, %v68
    %v71 = vmul.f32 %v69, %v69
    %v72 = vadd.f32 %v70, %v71
    %73 = vadd.xlane.f32.xlu0 %v72
    %v74 = vpop.xlane.xlu0 %73
    %v75 = vrot.slane %v74, 4
    %v76 = vadd.f32 %v74, %v75
    %v77 = vrot.slane %v76, 2
    %v78 = vadd.f32 %v76, %v77
    %v79 = vrot.slane %v78, 1
    %v80 = vadd.f32 %v78, %v79
    %s81 = vtos %v80
    %82 = vrot.lane.b32.xlu0 %v43, 112
    %v83 = vpop.permute.xlu0 %82
    %84 = vrot.lane.b32.xlu0 %v44, 112
    %v85 = vpop.permute.xlu0 %84
    %vm86 = vcmp.lt.s32.totalorder %v50, 112
    %v87 = vsel %vm86, %v83, %v85
    %v88 = vsel %vm86, %v85, %v83
    %v89 = vsub.f32 %v87, %v43
    %v90 = vsub.f32 %v88, %v44
    %v91 = vadd.s32 %v50, 128
    %vm92 = vcmp.lt.s32.totalorder %v50, 240
    %vm93 = vcmp.lt.s32.totalorder %v91, 240
    %v94 = vsel %vm92, %v89, 0.0
    %v95 = vsel %vm93, %v90, 0.0
    %v96 = vmul.f32 %v94, %v94
    %v97 = vmul.f32 %v95, %v95
    %v98 = vadd.f32 %v96, %v97
    %99 = vadd.xlane.f32.xlu0 %v98
    %v100 = vpop.xlane.xlu0 %99
    %v101 = vrot.slane %v100, 4
    %v102 = vadd.f32 %v100, %v101
    %v103 = vrot.slane %v102, 2
    %v104 = vadd.f32 %v102, %v103
    %v105 = vrot.slane %v104, 1
    %v106 = vadd.f32 %v104, %v105
    %s107 = vtos %v106
    %s108 = sadd.f32 %s81, %s107
    %v109 = vstv %s108
    %110 = vst [vmem:[#allocation7] sm:$0xff] %v109
    // Predicated region
    $region22: #{tpu_custom_call.1} parent=1 // pred_check
      _
    $region23: #{tpu_custom_call.1} parent=1 // pred_check_branch
      %112 = sbr.rel (0) target = $region25
    $region24: #{tpu_custom_call.1} parent=1 // pred_region
      %s114 = ssub.s32 128, 128
      %115 = vsyncadd [#allocation4], %s114
      %s117 = sshll.u32 [#allocation7], 4
      %s118 = int_to_ptr.vmem [resolvable:$true] %s117
      %120 = dma.vmem_to_hbm [thread:$0]  %s118, 128, %s3, [#allocation4]
    $region25: #{tpu_custom_call.1} parent=1 // pred_fallthru
      _
    // Predicated region
    $region26: #{tpu_custom_call.1} parent=1 // pred_check
      _
    $region27: #{tpu_custom_call.1} parent=1 // pred_check_branch
      %122 = sbr.rel (0) target = $region29
    $region28: #{tpu_custom_call.1} parent=1 // pred_region
      %123 = dma.done [#allocation4], 128
    $region29: #{tpu_custom_call.1} parent=1 // pred_fallthru
      _
    %124 = vsyncpa [#allocation3], 1
    %125 = vsyncpa [#allocation6], 1
    %126 = vsyncpa [#allocation4], 1

</llo_original>
